<compile_context>
chip_gen: v7x
topology: tpu7x:2x2x1
jax: 0.10.0
libtpu: 0.0.40
codegen_flags: <defaults>
</compile_context>

<pallas_src>
import functools

import jax
import jax.numpy as jnp
from jax.experimental import pallas as pl
from jax.experimental.pallas import tpu as pltpu


def _round_up(v, mult):
    return ((v + mult - 1) // mult) * mult


def _pad2d(a, shape):
    pads = [(0, t - s) for s, t in zip(a.shape, shape)]
    if all(p == (0, 0) for p in pads):
        return a
    return jnp.pad(a, pads)


# ---------------------------------------------------------------------------
# Kernels
# ---------------------------------------------------------------------------
def _ffn_stream_kernel(x_ref, w1_ref, b1_ref, w2_ref, b2_ref, o_ref, acc_ref):
    """Streaming path. grid = (m_tile, h_chunk); h is the innermost reduction.

        acc[m] += relu(x[m] @ W1[:, h] + b1[h]) @ W2[h, :]

    The (TM, E_pad) f32 accumulator lives in VMEM scratch; the output block is
    written exactly once (cast to the output dtype, + b2) on the last h step.
    b1 is fully resident and sliced per chunk (no per-step DMA descriptor).
    """
    h = pl.program_id(1)
    th = w1_ref.shape[1]

    @pl.when(h == 0)
    def _():
        acc_ref[...] = jnp.zeros_like(acc_ref)

    start = pl.multiple_of(h * th, 128)
    hidden = jnp.dot(x_ref[...], w1_ref[...], preferred_element_type=jnp.float32)
    hidden = jnp.maximum(hidden + b1_ref[:, pl.ds(start, th)], 0.0)
    acc_ref[...] += jnp.dot(hidden.astype(w2_ref.dtype), w2_ref[...],
                            preferred_element_type=jnp.float32)

    @pl.when(h == pl.num_programs(1) - 1)
    def _():
        o_ref[...] = (acc_ref[...] + b2_ref[...]).astype(o_ref.dtype)


def _ffn_resident_kernel(x_ref, w1_ref, b1_ref, w2_ref, b2_ref, o_ref, acc_ref,
                         *, th):
    """Weight-resident path. grid = (m_tile,).

    Full W1/W2/b1/b2 stay in VMEM (constant-index BlockSpecs); the hidden
    dimension is reduced with an in-kernel loop over chunks of `th`, keeping
    the hidden activation bounded to (TM, th).
    """
    acc_ref[...] = jnp.zeros_like(acc_ref)
    n_chunks = w1_ref.shape[1] // th

    def body(h, carry):
        start = pl.multiple_of(h * th, 128)
        hidden = jnp.dot(x_ref[...], w1_ref[:, pl.ds(start, th)],
                         preferred_element_type=jnp.float32)
        hidden = jnp.maximum(hidden + b1_ref[:, pl.ds(start, th)], 0.0)
        acc_ref[...] += jnp.dot(hidden.astype(w2_ref.dtype),
                                w2_ref[pl.ds(start, th), :],
                                preferred_element_type=jnp.float32)
        return carry

    jax.lax.fori_loop(0, n_chunks, body, 0)
    o_ref[...] = (acc_ref[...] + b2_ref[...]).astype(o_ref.dtype)


# ---------------------------------------------------------------------------
# Wrapper
# ---------------------------------------------------------------------------
def feed_forward(x, w1, b1, w2, b2, *, tm=1024, hidden_tile=1024,
                 weight_buffer_count=2, force_streaming=False):
    """x: (..., E). w1: (E, H), b1: (H,), w2: (H, E), b2: (E,).

    Returns the same shape/dtype as x. Weights may be f32 or bf16 (bf16 halves
    weight HBM traffic; matmuls cast operands to the weight dtype, accumulate
    in f32).
    """
    orig_shape = x.shape
    out_dtype = x.dtype
    E = orig_shape[-1]
    H = w1.shape[1]
    x2d = x.reshape(-1, E)
    M = x2d.shape[0]

    w_dtype = w1.dtype
    w_bytes = jnp.dtype(w_dtype).itemsize
    out_bytes = jnp.dtype(out_dtype).itemsize

    # Pre-cast x to the weight dtype once (halves x DMA for bf16 weights and
    # removes the repeated in-kernel cast of the resident x tile). Biases stay
    # f32 -- they feed the f32 accumulator and their traffic is negligible.
    x2d = x2d.astype(w_dtype)
    b1f = b1.astype(jnp.float32)
    b2f = b2.astype(jnp.float32)

    E_pad = _round_up(E, 128)

    TM = min(_round_up(tm, 8), _round_up(M, 8))
    TH = min(_round_up(hidden_tile, 128), _round_up(H, 128))
    # Prefer 256-aligned hidden chunks (fills the 256x256 MXU on v6e/v7x).
    if TH % 256 != 0 and _round_up(H, 128) >= _round_up(TH, 256):
        TH = _round_up(TH, 256)

    # VMEM budget from the actual chip (128 MiB v5e/v6e, 64 MiB v7x), with
    # headroom for compiler-internal scratch.
    try:
        phys_vmem = int(pltpu.get_tpu_info().vmem_capacity_bytes)
    except Exception:  # unknown target: assume the smallest (v7x, 64 MiB)
        phys_vmem = 64 * 1024 * 1024
    budget = int(phys_vmem * 0.85)
    margin = 8 * 1024 * 1024

    def h_pad_for(th_):
        return _round_up(H, th_)

    def stream_bytes(tm_, th_):
        hp = h_pad_for(th_)
        return (2 * tm_ * E_pad * w_bytes        # x tile (double buffered)
                + 2 * E_pad * th_ * w_bytes      # W1 chunk
                + 2 * th_ * E_pad * w_bytes      # W2 chunk
                + 2 * (hp + E_pad) * 4           # resident b1 / b2 (f32)
                + tm_ * E_pad * 4                # f32 accumulator scratch
                + 2 * tm_ * E_pad * out_bytes    # output tile
                + tm_ * th_ * 4)                 # hidden intermediate

    def resident_bytes(tm_, th_):
        hp = h_pad_for(th_)
        return (2 * tm_ * E_pad * w_bytes
                + 2 * E_pad * hp * w_bytes       # full W1 (conservative 2x)
                + 2 * hp * E_pad * w_bytes       # full W2 (conservative 2x)
                + 2 * (hp + E_pad) * 4
                + tm_ * E_pad * 4
                + 2 * tm_ * E_pad * out_bytes
                + tm_ * th_ * 4)

    # Path selection: weight-resident if it fits (shrinking TM down to 256 if
    # needed); otherwise stream weight chunks, shrinking TH then TM to fit.
    use_resident = False
    if not force_streaming:
        tm_res = TM
        while resident_bytes(tm_res, TH) + margin > budget and tm_res > 256:
            tm_res = max(256, _round_up(tm_res // 2, 8))
        if resident_bytes(tm_res, TH) + margin <= budget:
            use_resident = True
            TM = tm_res

    if not use_resident:
        while stream_bytes(TM, TH) + margin > budget and TH > 128:
            TH = max(128, _round_up(TH // 2, 128))
        while stream_bytes(TM, TH) + margin > budget and TM > 8:
            TM = max(8, _round_up(TM // 2, 8))

    H_pad = h_pad_for(TH)
    M_pad = _round_up(M, TM)

    x_p = _pad2d(x2d, (M_pad, E_pad))
    w1_p = _pad2d(w1, (E_pad, H_pad))
    b1_p = _pad2d(b1f.reshape(1, -1), (1, H_pad))
    w2_p = _pad2d(w2, (H_pad, E_pad))
    b2_p = _pad2d(b2f.reshape(1, -1), (1, E_pad))

    m_tiles = M_pad // TM

    if use_resident:
        grid = (m_tiles,)
        kernel = functools.partial(_ffn_resident_kernel, th=TH)
        in_specs = [
            pl.BlockSpec((TM, E_pad), lambda m: (m, 0)),       # x tile
            pl.BlockSpec((E_pad, H_pad), lambda m: (0, 0)),    # W1 (resident)
            pl.BlockSpec((1, H_pad), lambda m: (0, 0)),        # b1 (resident)
            pl.BlockSpec((H_pad, E_pad), lambda m: (0, 0)),    # W2 (resident)
            pl.BlockSpec((1, E_pad), lambda m: (0, 0)),        # b2 (resident)
        ]
        out_specs = pl.BlockSpec((TM, E_pad), lambda m: (m, 0))
        dims = ("parallel",)
        footprint = resident_bytes(TM, TH)
        weight_passes = 1
    else:
        grid = (m_tiles, H_pad // TH)
        kernel = _ffn_stream_kernel
        # Deeper weight buffering (e.g. 3 on v5e) hides DMA jitter; sweep knob.
        w_pipe = (dict(pipeline_mode=pl.Buffered(weight_buffer_count))
                  if weight_buffer_count != 2 else {})
        in_specs = [
            pl.BlockSpec((TM, E_pad), lambda m, h: (m, 0)),              # x tile
            pl.BlockSpec((E_pad, TH), lambda m, h: (0, h), **w_pipe),    # W1 chunk
            pl.BlockSpec((1, H_pad), lambda m, h: (0, 0)),               # b1 (resident)
            pl.BlockSpec((TH, E_pad), lambda m, h: (h, 0), **w_pipe),    # W2 chunk
            pl.BlockSpec((1, E_pad), lambda m, h: (0, 0)),               # b2 (resident)
        ]
        out_specs = pl.BlockSpec((TM, E_pad), lambda m, h: (m, 0))
        dims = ("parallel", "arbitrary")
        footprint = stream_bytes(TM, TH)
        weight_passes = m_tiles

    vmem_limit = int(max(min(footprint + margin, budget), 16 * 1024 * 1024))

    cost = pl.CostEstimate(
        flops=4 * M_pad * E_pad * H_pad,
        transcendentals=0,
        bytes_accessed=int(
            M_pad * E_pad * (w_bytes + out_bytes)                 # x in, out
            + weight_passes * 2 * E_pad * H_pad * w_bytes         # weights
            + (H_pad + E_pad) * 4),                               # biases
    )

    out = pl.pallas_call(
        kernel,
        out_shape=jax.ShapeDtypeStruct((M_pad, E_pad), out_dtype),
        grid_spec=pltpu.PrefetchScalarGridSpec(
            num_scalar_prefetch=0,
            grid=grid,
            in_specs=in_specs,
            out_specs=out_specs,
            scratch_shapes=[pltpu.VMEM((TM, E_pad), jnp.float32)],
        ),
        compiler_params=pltpu.CompilerParams(
            dimension_semantics=dims,
            vmem_limit_bytes=vmem_limit,
        ),
        cost_estimate=cost,
    )(x_p, w1_p, b1_p, w2_p, b2_p)

    return out[:M, :E].reshape(orig_shape)


def init_feed_forward_params(key, embedding_dimension, output_scale=512,
                             dtype=jnp.float32):
    """Deterministic init mirroring torch.nn.Linear defaults U(-1/sqrt(fan_in), +)."""
    E = embedding_dimension
    H = output_scale * E
    k1, k2, k3, k4 = jax.random.split(key, 4)
    bound1 = 1.0 / (E ** 0.5)
    bound2 = 1.0 / (H ** 0.5)
    # Stored transposed relative to torch (torch weight is (out, in)); we keep (in, out).
    w1 = jax.random.uniform(k1, (E, H), dtype, minval=-bound1, maxval=bound1)
    b1 = jax.random.uniform(k2, (H,), dtype, minval=-bound1, maxval=bound1)
    w2 = jax.random.uniform(k3, (H, E), dtype, minval=-bound2, maxval=bound2)
    b2 = jax.random.uniform(k4, (E,), dtype, minval=-bound2, maxval=bound2)
    return w1, b1, w2, b2


if __name__ == "__main__":
    # Small, forward-consistent shapes: batch=2, seq=8, embedding_dimension=8.
    # Hidden size = 512 * 8 = 4096 (per the module's output_scale).
    E = 8
    B, S = 2, 8
    dropout = 0.1  # inference mode -> identity

    key = jax.random.PRNGKey(0)
    kx, kp = jax.random.split(key)
    x = jax.random.normal(kx, (B, S, E), dtype=jnp.float32)
    w1, b1, w2, b2 = init_feed_forward_params(kp, E)

    ref = (jnp.maximum(x.reshape(-1, E) @ w1 + b1, 0.0) @ w2 + b2).reshape(B, S, E)

    # 1) f32 weights, weight-resident fast path (default): tight check.
    ffn = jax.jit(functools.partial(feed_forward, tm=1024, hidden_tile=1024))
    out = jax.block_until_ready(ffn(x, w1, b1, w2, b2))
    assert out.shape == x.shape and out.dtype == x.dtype
    assert jnp.allclose(out, ref, atol=2e-4, rtol=2e-4), "f32 resident mismatch"

    # 2) bf16 weight path (halves weight HBM traffic, f32 accumulation).
    w1b, b1b, w2b, b2b = (a.astype(jnp.bfloat16) for a in (w1, b1, w2, b2))
    out_bf16 = jax.block_until_ready(ffn(x, w1b, b1b, w2b, b2b))
    assert out_bf16.shape == x.shape and out_bf16.dtype == x.dtype
    assert jnp.allclose(out_bf16, ref, atol=5e-2, rtol=5e-2), "bf16 mismatch"

    # 3) Streaming fallback path (forced), multiple m tiles and h chunks.
    ffn_stream = jax.jit(functools.partial(feed_forward, tm=8, hidden_tile=512,
                                           force_streaming=True))
    out_s = jax.block_until_ready(ffn_stream(x, w1, b1, w2, b2))
    assert out_s.shape == x.shape and out_s.dtype == x.dtype
    assert jnp.allclose(out_s, ref, atol=2e-4, rtol=2e-4), "f32 streaming mismatch"

    print("KERNEL_OK")
</pallas_src>

<mosaic_0001>
module attributes {stable_mosaic.version = 11 : i64} {
  func.func @_ffn_resident_kernel(%arg0: i32, %arg1: memref<16x128xf32, #tpu.memory_space<vmem>>, %arg2: memref<128x4096xf32, #tpu.memory_space<vmem>>, %arg3: memref<1x4096xf32, #tpu.memory_space<vmem>>, %arg4: memref<4096x128xf32, #tpu.memory_space<vmem>>, %arg5: memref<1x128xf32, #tpu.memory_space<vmem>>, %arg6: memref<16x128xf32, #tpu.memory_space<vmem>>, %arg7: memref<16x128xf32, #tpu.memory_space<vmem>>) attributes {dimension_semantics = [#tpu.dimension_semantics<parallel>], iteration_bounds = array<i64: 1>, scalar_prefetch = 0 : i64, scratch_operands = 1 : i64, tpu.core_type = #tpu.core_type<tc>, window_params = [{transform_indices = @transform_0, window_bounds = array<i64: 16, 128>}, {pipeline_mode = #tpu.pipeline_mode<synchronous>, transform_indices = @transform_1, window_bounds = array<i64: 128, 4096>}, {pipeline_mode = #tpu.pipeline_mode<synchronous>, transform_indices = @transform_2, window_bounds = array<i64: 1, 4096>}, {pipeline_mode = #tpu.pipeline_mode<synchronous>, transform_indices = @transform_3, window_bounds = array<i64: 4096, 128>}, {pipeline_mode = #tpu.pipeline_mode<synchronous>, transform_indices = @transform_4, window_bounds = array<i64: 1, 128>}, {transform_indices = @transform_5, window_bounds = array<i64: 16, 128>}]} {
    %cst = arith.constant 0.000000e+00 : f32
    %0 = vector.broadcast %cst : f32 to vector<16x128xf32>
    %c0 = arith.constant 0 : index
    %c0_0 = arith.constant 0 : index
    %1 = vector.load %arg7[%c0, %c0_0] : memref<16x128xf32, #tpu.memory_space<vmem>>, vector<16x128xf32>
    tpu.vector_store %arg7[%c0, %c0_0], %0 {strides = array<i32>} : memref<16x128xf32, #tpu.memory_space<vmem>>, vector<16x128xf32>,
    %c0_i32 = arith.constant 0 : i32
    %c4_i32 = arith.constant 4 : i32
    %2 = arith.addi %c0_i32, %c4_i32 : i32
    %c1_i32 = arith.constant 1 : i32
    scf.for %arg8 = %c0_i32 to %2 step %c1_i32  : i32 {
      %c1024_i32 = arith.constant 1024 : i32
      %8 = arith.muli %arg8, %c1024_i32 : i32
      %9 = tpu.assume_multiple %8, 128 : i32
      %c0_8 = arith.constant 0 : index
      %c0_9 = arith.constant 0 : index
      %10 = vector.load %arg1[%c0_8, %c0_9] : memref<16x128xf32, #tpu.memory_space<vmem>>, vector<16x128xf32>
      %c0_10 = arith.constant 0 : index
      %11 = arith.index_cast %9 : i32 to index
      %12 = vector.load %arg2[%c0_10, %11] : memref<128x4096xf32, #tpu.memory_space<vmem>>, vector<128x1024xf32>
      %cst_11 = arith.constant dense<0.000000e+00> : vector<16x1024xf32>
      %13 = tpu.matmul %10, %12, %cst_11 {dimension_numbers = #tpu.dot_dimension_numbers<[1], [0], [0], [1], [0, 0, 1, 1], [], []>} : vector<16x128xf32>, vector<128x1024xf32>, vector<16x1024xf32> -> vector<16x1024xf32>
      %c0_12 = arith.constant 0 : index
      %14 = arith.index_cast %9 : i32 to index
      %15 = vector.load %arg3[%c0_12, %14] : memref<1x4096xf32, #tpu.memory_space<vmem>>, vector<1x1024xf32>
      %16 = vector.broadcast %15 : vector<1x1024xf32> to vector<16x1024xf32>
      %17 = arith.addf %13, %16 : vector<16x1024xf32>
      %cst_13 = arith.constant 0.000000e+00 : f32
      %18 = vector.broadcast %cst_13 : f32 to vector<16x1024xf32>
      %19 = arith.maximumf %17, %18 : vector<16x1024xf32>
      %c0_14 = arith.constant 0 : index
      %c0_15 = arith.constant 0 : index
      %20 = vector.load %arg7[%c0_14, %c0_15] : memref<16x128xf32, #tpu.memory_space<vmem>>, vector<16x128xf32>
      %21 = arith.index_cast %9 : i32 to index
      %c0_16 = arith.constant 0 : index
      %22 = vector.load %arg4[%21, %c0_16] : memref<4096x128xf32, #tpu.memory_space<vmem>>, vector<1024x128xf32>
      %cst_17 = arith.constant dense<0.000000e+00> : vector<16x128xf32>
      %23 = tpu.matmul %19, %22, %cst_17 {dimension_numbers = #tpu.dot_dimension_numbers<[1], [0], [0], [1], [0, 0, 1, 1], [], []>} : vector<16x1024xf32>, vector<1024x128xf32>, vector<16x128xf32> -> vector<16x128xf32>
      %24 = arith.addf %20, %23 : vector<16x128xf32>
      %c0_18 = arith.constant 0 : index
      %c0_19 = arith.constant 0 : index
      %25 = vector.load %arg7[%c0_18, %c0_19] : memref<16x128xf32, #tpu.memory_space<vmem>>, vector<16x128xf32>
      tpu.vector_store %arg7[%c0_18, %c0_19], %24 {strides = array<i32>} : memref<16x128xf32, #tpu.memory_space<vmem>>, vector<16x128xf32>,
    }
    %c4_i32_1 = arith.constant 4 : i32
    %c0_2 = arith.constant 0 : index
    %c0_3 = arith.constant 0 : index
    %3 = vector.load %arg7[%c0_2, %c0_3] : memref<16x128xf32, #tpu.memory_space<vmem>>, vector<16x128xf32>
    %c0_4 = arith.constant 0 : index
    %c0_5 = arith.constant 0 : index
    %4 = vector.load %arg5[%c0_4, %c0_5] : memref<1x128xf32, #tpu.memory_space<vmem>>, vector<1x128xf32>
    %5 = vector.broadcast %4 : vector<1x128xf32> to vector<16x128xf32>
    %6 = arith.addf %3, %5 : vector<16x128xf32>
    %c0_6 = arith.constant 0 : index
    %c0_7 = arith.constant 0 : index
    %7 = vector.load %arg6[%c0_6, %c0_7] : memref<16x128xf32, #tpu.memory_space<vmem>>, vector<16x128xf32>
    tpu.vector_store %arg6[%c0_6, %c0_7], %6 {strides = array<i32>} : memref<16x128xf32, #tpu.memory_space<vmem>>, vector<16x128xf32>,
    return
  }
  func.func @transform_0(%arg0: i32) -> (i32, i32) {
    %c0_i32 = arith.constant 0 : i32
    %c0_i32_0 = arith.constant 0 : i32
    return %arg0, %c0_i32 : i32, i32
  }
  func.func @transform_1(%arg0: i32) -> (i32, i32) {
    %c0_i32 = arith.constant 0 : i32
    %c0_i32_0 = arith.constant 0 : i32
    %c0_i32_1 = arith.constant 0 : i32
    return %c0_i32, %c0_i32_0 : i32, i32
  }
  func.func @transform_2(%arg0: i32) -> (i32, i32) {
    %c0_i32 = arith.constant 0 : i32
    %c0_i32_0 = arith.constant 0 : i32
    %c0_i32_1 = arith.constant 0 : i32
    return %c0_i32, %c0_i32_0 : i32, i32
  }
  func.func @transform_3(%arg0: i32) -> (i32, i32) {
    %c0_i32 = arith.constant 0 : i32
    %c0_i32_0 = arith.constant 0 : i32
    %c0_i32_1 = arith.constant 0 : i32
    return %c0_i32, %c0_i32_0 : i32, i32
  }
  func.func @transform_4(%arg0: i32) -> (i32, i32) {
    %c0_i32 = arith.constant 0 : i32
    %c0_i32_0 = arith.constant 0 : i32
    %c0_i32_1 = arith.constant 0 : i32
    return %c0_i32, %c0_i32_0 : i32, i32
  }
  func.func @transform_5(%arg0: i32) -> (i32, i32) {
    %c0_i32 = arith.constant 0 : i32
    %c0_i32_0 = arith.constant 0 : i32
    return %arg0, %c0_i32 : i32, i32
  }
}

</mosaic_0001>

<llo_original>
// kernel: feed_forward.1
$region0: #{feed_forward.1}
  #allocation0 [shape = 'u32[]', space=smem, size = 0x4, offset = 0x4, fixed_abs, tag = 'smem constant byte address 0x4 - core index']
  #allocation1 [shape = 'u32[144,128]{1,0:T(1,128)}', space=vmem, size = 0x12000, scoped, tag = 'internal scratch']
  #allocation2 [shape = 'f32[16,128]{1,0:T(8,128)}', space=vmem, size = 0x2000, scoped, tag = 'scratch operand']
  %s0 = inlined_call_operand.vmem [shape: f32[16,128], index: 0, kind: input, shape index: {}]
  %s1 = inlined_call_operand.vmem [shape: f32[128,4096], index: 1, kind: input, shape index: {}]
  %s2 = inlined_call_operand.vmem [shape: f32[1,4096], index: 2, kind: input, shape index: {}]
  %s3 = inlined_call_operand.vmem [shape: f32[4096,128], index: 3, kind: input, shape index: {}]
  %s4 = inlined_call_operand.vmem [shape: f32[1,128], index: 4, kind: input, shape index: {}]
  %s5 = inlined_call_operand.vmem [shape: f32[16,128], index: 5, kind: output, shape index: {}]
  %s6 = sld [smem:[#allocation0]]
  $region37: #{feed_forward.1} parent=0
    _
  %s8 = ssub.s32 1, %s6
  %s9 = scalar_select 0, %s8, %s6
  // Predicated region
  $region2: #{feed_forward.1} parent=0 // pred_check
    _
  $region3: #{feed_forward.1} parent=0 // pred_check_branch
    %11 = sbr.rel (0) target = $region5
  $region4: #{feed_forward.1} parent=0 // pred_region
    _
  $region5: #{feed_forward.1} parent=0 // pred_fallthru
    _
  // Predicated region
  $region6: #{feed_forward.1} parent=0 // pred_check
    _
  $region7: #{feed_forward.1} parent=0 // pred_check_branch
    %13 = sbr.rel (0) target = $region9
  $region8: #{feed_forward.1} parent=0 // pred_region
    _
  $region9: #{feed_forward.1} parent=0 // pred_fallthru
    _
  // Predicated region
  $region10: #{feed_forward.1} parent=0 // pred_check
    _
  $region11: #{feed_forward.1} parent=0 // pred_check_branch
    %15 = sbr.rel (0) target = $region13
  $region12: #{feed_forward.1} parent=0 // pred_region
    _
  $region13: #{feed_forward.1} parent=0 // pred_fallthru
    _
  // Predicated region
  $region14: #{feed_forward.1} parent=0 // pred_check
    _
  $region15: #{feed_forward.1} parent=0 // pred_check_branch
    %17 = sbr.rel (0) target = $region17
  $region16: #{feed_forward.1} parent=0 // pred_region
    _
  $region17: #{feed_forward.1} parent=0 // pred_fallthru
    _
  // Predicated region
  $region18: #{feed_forward.1} parent=0 // pred_check
    _
  $region19: #{feed_forward.1} parent=0 // pred_check_branch
    %19 = sbr.rel (0) target = $region21
  $region20: #{feed_forward.1} parent=0 // pred_region
    _
  $region21: #{feed_forward.1} parent=0 // pred_fallthru
    _
  %20 = vst [vmem:[#allocation2] sm:$0xff] 0.0
  %21 = vst [vmem:[#allocation2 + $0x8] sm:$0xff] 0.0
  loop: start=0, step=1, limit=4
  $region22: #{feed_forward.1} parent=0 // loop_pre_header
    _
  $region23: #{feed_forward.1} parent=0 // loop_header
    %s23 = sphi 0, %s27
    %p24 = scmp.ge.s32.totalorder %s23, 4
  $region24: #{feed_forward.1} parent=0 // loop_header_branch
    %26 = sbr.rel (%p24) target = $region28
  $region25: #{feed_forward.1} parent=0 // loop_body
    %s28 = smul.u32 %s23, 1024
    %v29 = vld [vmem:[%s0] sm:$0xff]
    %v30 = vld [vmem:[%s0 + $0x8] sm:$0xff]
    %s31 = sshra.s32 %s28, 7
    %s32 = sand.u32 %s28, 127
    %s33 = smul.addr %s31, 8
    %s34 = scalar_lea.vmem %s1, %s33
    %v35 = vld [vmem:[%s34] sm:$0xff]
    %v36 = vld [vmem:[%s34 + $0x8] sm:$0xff]
    %v37 = vld [vmem:[%s34 + $0x10] sm:$0xff]
    %v38 = vld [vmem:[%s34 + $0x18] sm:$0xff]
    %v39 = vld [vmem:[%s34 + $0x20] sm:$0xff]
    %v40 = vld [vmem:[%s34 + $0x28] sm:$0xff]
    %v41 = vld [vmem:[%s34 + $0x30] sm:$0xff]
    %v42 = vld [vmem:[%s34 + $0x38] sm:$0xff]
    %v43 = vld [vmem:[%s34 + $0x100] sm:$0xff]
    %v44 = vld [vmem:[%s34 + $0x108] sm:$0xff]
    %v45 = vld [vmem:[%s34 + $0x110] sm:$0xff]
    %v46 = vld [vmem:[%s34 + $0x118] sm:$0xff]
    %v47 = vld [vmem:[%s34 + $0x120] sm:$0xff]
    %v48 = vld [vmem:[%s34 + $0x128] sm:$0xff]
    %v49 = vld [vmem:[%s34 + $0x130] sm:$0xff]
    %v50 = vld [vmem:[%s34 + $0x138] sm:$0xff]
    %v51 = vld [vmem:[%s34 + $0x200] sm:$0xff]
    %v52 = vld [vmem:[%s34 + $0x208] sm:$0xff]
    %v53 = vld [vmem:[%s34 + $0x210] sm:$0xff]
    %v54 = vld [vmem:[%s34 + $0x218] sm:$0xff]
    %v55 = vld [vmem:[%s34 + $0x220] sm:$0xff]
    %v56 = vld [vmem:[%s34 + $0x228] sm:$0xff]
    %v57 = vld [vmem:[%s34 + $0x230] sm:$0xff]
    %v58 = vld [vmem:[%s34 + $0x238] sm:$0xff]
    %v59 = vld [vmem:[%s34 + $0x300] sm:$0xff]
    %v60 = vld [vmem:[%s34 + $0x308] sm:$0xff]
    %v61 = vld [vmem:[%s34 + $0x310] sm:$0xff]
    %v62 = vld [vmem:[%s34 + $0x318] sm:$0xff]
    %v63 = vld [vmem:[%s34 + $0x320] sm:$0xff]
    %v64 = vld [vmem:[%s34 + $0x328] sm:$0xff]
    %v65 = vld [vmem:[%s34 + $0x330] sm:$0xff]
    %v66 = vld [vmem:[%s34 + $0x338] sm:$0xff]
    %v67 = vld [vmem:[%s34 + $0x400] sm:$0xff]
    %v68 = vld [vmem:[%s34 + $0x408] sm:$0xff]
    %v69 = vld [vmem:[%s34 + $0x410] sm:$0xff]
    %v70 = vld [vmem:[%s34 + $0x418] sm:$0xff]
    %v71 = vld [vmem:[%s34 + $0x420] sm:$0xff]
    %v72 = vld [vmem:[%s34 + $0x428] sm:$0xff]
    %v73 = vld [vmem:[%s34 + $0x430] sm:$0xff]
    %v74 = vld [vmem:[%s34 + $0x438] sm:$0xff]
    %v75 = vld [vmem:[%s34 + $0x500] sm:$0xff]
    %v76 = vld [vmem:[%s34 + $0x508] sm:$0xff]
    %v77 = vld [vmem:[%s34 + $0x510] sm:$0xff]
    %v78 = vld [vmem:[%s34 + $0x518] sm:$0xff]
    %v79 = vld [vmem:[%s34 + $0x520] sm:$0xff]
    %v80 = vld [vmem:[%s34 + $0x528] sm:$0xff]
    %v81 = vld [vmem:[%s34 + $0x530] sm:$0xff]
    %v82 = vld [vmem:[%s34 + $0x538] sm:$0xff]
    %v83 = vld [vmem:[%s34 + $0x600] sm:$0xff]
    %v84 = vld [vmem:[%s34 + $0x608] sm:$0xff]
    %v85 = vld [vmem:[%s34 + $0x610] sm:$0xff]
    %v86 = vld [vmem:[%s34 + $0x618] sm:$0xff]
    %v87 = vld [vmem:[%s34 + $0x620] sm:$0xff]
    %v88 = vld [vmem:[%s34 + $0x628] sm:$0xff]
    %v89 = vld [vmem:[%s34 + $0x630] sm:$0xff]
    %v90 = vld [vmem:[%s34 + $0x638] sm:$0xff]
    %v91 = vld [vmem:[%s34 + $0x700] sm:$0xff]
    %v92 = vld [vmem:[%s34 + $0x708] sm:$0xff]
    %v93 = vld [vmem:[%s34 + $0x710] sm:$0xff]
    %v94 = vld [vmem:[%s34 + $0x718] sm:$0xff]
    %v95 = vld [vmem:[%s34 + $0x720] sm:$0xff]
    %v96 = vld [vmem:[%s34 + $0x728] sm:$0xff]
    %v97 = vld [vmem:[%s34 + $0x730] sm:$0xff]
    %v98 = vld [vmem:[%s34 + $0x738] sm:$0xff]
    %v99 = vld [vmem:[%s34 + $0x800] sm:$0xff]
    %v100 = vld [vmem:[%s34 + $0x808] sm:$0xff]
    %v101 = vld [vmem:[%s34 + $0x810] sm:$0xff]
    %v102 = vld [vmem:[%s34 + $0x818] sm:$0xff]
    %v103 = vld [vmem:[%s34 + $0x820] sm:$0xff]
    %v104 = vld [vmem:[%s34 + $0x828] sm:$0xff]
    %v105 = vld [vmem:[%s34 + $0x830] sm:$0xff]
    %v106 = vld [vmem:[%s34 + $0x838] sm:$0xff]
    %v107 = vld [vmem:[%s34 + $0x900] sm:$0xff]
    %v108 = vld [vmem:[%s34 + $0x908] sm:$0xff]
    %v109 = vld [vmem:[%s34 + $0x910] sm:$0xff]
    %v110 = vld [vmem:[%s34 + $0x918] sm:$0xff]
    %v111 = vld [vmem:[%s34 + $0x920] sm:$0xff]
    %v112 = vld [vmem:[%s34 + $0x928] sm:$0xff]
    %v113 = vld [vmem:[%s34 + $0x930] sm:$0xff]
    %v114 = vld [vmem:[%s34 + $0x938] sm:$0xff]
    %v115 = vld [vmem:[%s34 + $0xa00] sm:$0xff]
    %v116 = vld [vmem:[%s34 + $0xa08] sm:$0xff]
    %v117 = vld [vmem:[%s34 + $0xa10] sm:$0xff]
    %v118 = vld [vmem:[%s34 + $0xa18] sm:$0xff]
    %v119 = vld [vmem:[%s34 + $0xa20] sm:$0xff]
    %v120 = vld [vmem:[%s34 + $0xa28] sm:$0xff]
    %v121 = vld [vmem:[%s34 + $0xa30] sm:$0xff]
    %v122 = vld [vmem:[%s34 + $0xa38] sm:$0xff]
    %v123 = vld [vmem:[%s34 + $0xb00] sm:$0xff]
    %v124 = vld [vmem:[%s34 + $0xb08] sm:$0xff]
    %v125 = vld [vmem:[%s34 + $0xb10] sm:$0xff]
    %v126 = vld [vmem:[%s34 + $0xb18] sm:$0xff]
    %v127 = vld [vmem:[%s34 + $0xb20] sm:$0xff]
    %v128 = vld [vmem:[%s34 + $0xb28] sm:$0xff]
    %v129 = vld [vmem:[%s34 + $0xb30] sm:$0xff]
    %v130 = vld [vmem:[%s34 + $0xb38] sm:$0xff]
    %v131 = vld [vmem:[%s34 + $0xc00] sm:$0xff]
    %v132 = vld [vmem:[%s34 + $0xc08] sm:$0xff]
    %v133 = vld [vmem:[%s34 + $0xc10] sm:$0xff]
    %v134 = vld [vmem:[%s34 + $0xc18] sm:$0xff]
    %v135 = vld [vmem:[%s34 + $0xc20] sm:$0xff]
    %v136 = vld [vmem:[%s34 + $0xc28] sm:$0xff]
    %v137 = vld [vmem:[%s34 + $0xc30] sm:$0xff]
    %v138 = vld [vmem:[%s34 + $0xc38] sm:$0xff]
    %v139 = vld [vmem:[%s34 + $0xd00] sm:$0xff]
    %v140 = vld [vmem:[%s34 + $0xd08] sm:$0xff]
    %v141 = vld [vmem:[%s34 + $0xd10] sm:$0xff]
    %v142 = vld [vmem:[%s34 + $0xd18] sm:$0xff]
    %v143 = vld [vmem:[%s34 + $0xd20] sm:$0xff]
    %v144 = vld [vmem:[%s34 + $0xd28] sm:$0xff]
    %v145 = vld [vmem:[%s34 + $0xd30] sm:$0xff]
    %v146 = vld [vmem:[%s34 + $0xd38] sm:$0xff]
    %v147 = vld [vmem:[%s34 + $0xe00] sm:$0xff]
    %v148 = vld [vmem:[%s34 + $0xe08] sm:$0xff]
    %v149 = vld [vmem:[%s34 + $0xe10] sm:$0xff]
    %v150 = vld [vmem:[%s34 + $0xe18] sm:$0xff]
    %v151 = vld [vmem:[%s34 + $0xe20] sm:$0xff]
    %v152 = vld [vmem:[%s34 + $0xe28] sm:$0xff]
    %v153 = vld [vmem:[%s34 + $0xe30] sm:$0xff]
    %v154 = vld [vmem:[%s34 + $0xe38] sm:$0xff]
    %v155 = vld [vmem:[%s34 + $0xf00] sm:$0xff]
    %v156 = vld [vmem:[%s34 + $0xf08] sm:$0xff]
    %v157 = vld [vmem:[%s34 + $0xf10] sm:$0xff]
    %v158 = vld [vmem:[%s34 + $0xf18] sm:$0xff]
    %v159 = vld [vmem:[%s34 + $0xf20] sm:$0xff]
    %v160 = vld [vmem:[%s34 + $0xf28] sm:$0xff]
    %v161 = vld [vmem:[%s34 + $0xf30] sm:$0xff]
    %v162 = vld [vmem:[%s34 + $0xf38] sm:$0xff]
    %s163 = scalar_lea.vmem %s2, %s31
    %v164 = vld [vmem:[%s163] sm:$0xff]
    %v166 = vlaneseq
    %v167 = vshrl.u32 %v166, 7
    %v168 = vsub.s32 0, %v167
    %v169 = vrot.slane %v164, %v168
    %v170 = vlaneseq
    %v171 = vshrl.u32 %v170, 7
    %v172 = vsub.s32 1, %v171
    %v173 = vrot.slane %v164, %v172
    %v174 = vlaneseq
    %v175 = vshrl.u32 %v174, 7
    %v176 = vsub.s32 2, %v175
    %v177 = vrot.slane %v164, %v176
    %v178 = vlaneseq
    %v179 = vshrl.u32 %v178, 7
    %v180 = vsub.s32 3, %v179
    %v181 = vrot.slane %v164, %v180
    %v182 = vlaneseq
    %v183 = vshrl.u32 %v182, 7
    %v184 = vsub.s32 4, %v183
    %v185 = vrot.slane %v164, %v184
    %v186 = vlaneseq
    %v187 = vshrl.u32 %v186, 7
    %v188 = vsub.s32 5, %v187
    %v189 = vrot.slane %v164, %v188
    %v190 = vlaneseq
    %v191 = vshrl.u32 %v190, 7
    %v192 = vsub.s32 6, %v191
    %v193 = vrot.slane %v164, %v192
    %v194 = vlaneseq
    %v195 = vshrl.u32 %v194, 7
    %v196 = vsub.s32 7, %v195
    %v197 = vrot.slane %v164, %v196
    %206 = vmatprep.subr.mxu0 %v36
    %207 = vmatpush1.msra.mxu0 %v35
    %208 = vmatprep.subr.mxu0 %v44
    %209 = vmatpush1.msra.mxu0 %v43
    %210 = vmatprep.subr.mxu0 %v52
    %211 = vmatpush1.msra.mxu0 %v51
    %212 = vmatprep.subr.mxu0 %v60
    %213 = vmatpush1.msra.mxu0 %v59
    %214 = vmatprep.subr.mxu0 %v68
    %215 = vmatpush1.msra.mxu0 %v67
    %216 = vmatprep.subr.mxu0 %v76
    %217 = vmatpush1.msra.mxu0 %v75
    %218 = vmatprep.subr.mxu0 %v84
    %219 = vmatpush1.msra.mxu0 %v83
    %220 = vmatprep.subr.mxu0 %v92
    %221 = vmatpush1.msra.mxu0 %v91
    %222 = vmatprep.subr.mxu0 %v100
    %223 = vmatpush1.msra.mxu0 %v99
    %224 = vmatprep.subr.mxu0 %v108
    %225 = vmatpush1.msra.mxu0 %v107
    %226 = vmatprep.subr.mxu0 %v116
    %227 = vmatpush1.msra.mxu0 %v115
    %228 = vmatprep.subr.mxu0 %v124
    %229 = vmatpush1.msra.mxu0 %v123
    %230 = vmatprep.subr.mxu0 %v132
    %231 = vmatpush1.msra.mxu0 %v131
    %232 = vmatprep.subr.mxu0 %v140
    %233 = vmatpush1.msra.mxu0 %v139
    %234 = vmatprep.subr.mxu0 %v148
    %235 = vmatpush1.msra.mxu0 %v147
    %236 = vmatprep.subr.mxu0 %v156
    %237 = vmatpush1.msra.mxu0 %v155
    %238 = vmatprep.subr.mxu0 0.0
    %239 = vmatpush1.msra.mxu0 0.0
    %240 = vmatprep.subr.mxu0 0.0
    %241 = vmatpush1.msra.mxu0 0.0
    %242 = vmatprep.subr.mxu0 0.0
    %243 = vmatpush1.msra.mxu0 0.0
    %244 = vmatprep.subr.mxu0 0.0
    %245 = vmatpush1.msra.mxu0 0.0
    %246 = vmatprep.subr.mxu0 0.0
    %247 = vmatpush1.msra.mxu0 0.0
    %248 = vmatprep.subr.mxu0 0.0
    %249 = vmatpush1.msra.mxu0 0.0
    %250 = vmatprep.subr.mxu0 0.0
    %251 = vmatpush1.msra.mxu0 0.0
    %252 = vmatprep.subr.mxu0 0.0
    %253 = vmatpush1.msra.mxu0 0.0
    %254 = vmatprep.subr.mxu0 0.0
    %255 = vmatpush1.msra.mxu0 0.0
    %256 = vmatprep.subr.mxu0 0.0
    %257 = vmatpush1.msra.mxu0 0.0
    %258 = vmatprep.subr.mxu0 0.0
    %259 = vmatpush1.msra.mxu0 0.0
    %260 = vmatprep.subr.mxu0 0.0
    %261 = vmatpush1.msra.mxu0 0.0
    %262 = vmatprep.subr.mxu0 0.0
    %263 = vmatpush1.msra.mxu0 0.0
    %264 = vmatprep.subr.mxu0 0.0
    %265 = vmatpush1.msra.mxu0 0.0
    %266 = vmatprep.subr.mxu0 0.0
    %267 = vmatpush1.msra.mxu0 0.0
    %268 = vmatprep.subr.mxu0 0.0
    %269 = vmatpush1.msra.mxu0 0.0
    %270 = vmatprep.mubr.f32.mxu0 0.0
    %271 = vmatmul.mubr.f32.gmra.mrb[0].mxu0 %v29
    %v272 = vpop.f32.mrb[0].mxu0
    %v273 = vadd.f32 %v169, %v272
    %v274 = vpop.f32.mrb[0].mxu0
    %v275 = vadd.f32 %v173, %v274
    %276 = vmatprep.mubr.f32.mxu0 0.0
    %277 = vmatmul.mubr.f32.gmra.mrb[0].mxu0 %v30
    %v278 = vpop.f32.mrb[0].mxu0
    %v279 = vadd.f32 %v169, %v278
    %v280 = vpop.f32.mrb[0].mxu0
    %v281 = vadd.f32 %v173, %v280
    %282 = vdwg.mxu0
    %283 = vmatprep.subr.mxu0 %v38
    %284 = vmatpush1.msra.mxu0 %v37
    %285 = vmatprep.subr.mxu0 %v46
    %286 = vmatpush1.msra.mxu0 %v45
    %287 = vmatprep.subr.mxu0 %v54
    %288 = vmatpush1.msra.mxu0 %v53
    %289 = vmatprep.subr.mxu0 %v62
    %290 = vmatpush1.msra.mxu0 %v61
    %291 = vmatprep.subr.mxu0 %v70
    %292 = vmatpush1.msra.mxu0 %v69
    %293 = vmatprep.subr.mxu0 %v78
    %294 = vmatpush1.msra.mxu0 %v77
    %295 = vmatprep.subr.mxu0 %v86
    %296 = vmatpush1.msra.mxu0 %v85
    %297 = vmatprep.subr.mxu0 %v94
    %298 = vmatpush1.msra.mxu0 %v93
    %299 = vmatprep.subr.mxu0 %v102
    %300 = vmatpush1.msra.mxu0 %v101
    %301 = vmatprep.subr.mxu0 %v110
    %302 = vmatpush1.msra.mxu0 %v109
    %303 = vmatprep.subr.mxu0 %v118
    %304 = vmatpush1.msra.mxu0 %v117
    %305 = vmatprep.subr.mxu0 %v126
    %306 = vmatpush1.msra.mxu0 %v125
    %307 = vmatprep.subr.mxu0 %v134
    %308 = vmatpush1.msra.mxu0 %v133
    %309 = vmatprep.subr.mxu0 %v142
    %310 = vmatpush1.msra.mxu0 %v141
    %311 = vmatprep.subr.mxu0 %v150
    %312 = vmatpush1.msra.mxu0 %v149
    %313 = vmatprep.subr.mxu0 %v158
    %314 = vmatpush1.msra.mxu0 %v157
    %315 = vmatprep.subr.mxu0 0.0
    %316 = vmatpush1.msra.mxu0 0.0
    %317 = vmatprep.subr.mxu0 0.0
    %318 = vmatpush1.msra.mxu0 0.0
    %319 = vmatprep.subr.mxu0 0.0
    %320 = vmatpush1.msra.mxu0 0.0
    %321 = vmatprep.subr.mxu0 0.0
    %322 = vmatpush1.msra.mxu0 0.0
    %323 = vmatprep.subr.mxu0 0.0
    %324 = vmatpush1.msra.mxu0 0.0
    %325 = vmatprep.subr.mxu0 0.0
    %326 = vmatpush1.msra.mxu0 0.0
    %327 = vmatprep.subr.mxu0 0.0
    %328 = vmatpush1.msra.mxu0 0.0
    %329 = vmatprep.subr.mxu0 0.0
    %330 = vmatpush1.msra.mxu0 0.0
    %331 = vmatprep.subr.mxu0 0.0
    %332 = vmatpush1.msra.mxu0 0.0
    %333 = vmatprep.subr.mxu0 0.0
    %334 = vmatpush1.msra.mxu0 0.0
    %335 = vmatprep.subr.mxu0 0.0
    %336 = vmatpush1.msra.mxu0 0.0
    %337 = vmatprep.subr.mxu0 0.0
    %338 = vmatpush1.msra.mxu0 0.0
    %339 = vmatprep.subr.mxu0 0.0
    %340 = vmatpush1.msra.mxu0 0.0
    %341 = vmatprep.subr.mxu0 0.0
    %342 = vmatpush1.msra.mxu0 0.0
    %343 = vmatprep.subr.mxu0 0.0
    %344 = vmatpush1.msra.mxu0 0.0
    %345 = vmatprep.subr.mxu0 0.0
    %346 = vmatpush1.msra.mxu0 0.0
    %347 = vmatprep.mubr.f32.mxu0 0.0
    %348 = vmatmul.mubr.f32.gmra.mrb[0].mxu0 %v29
    %v349 = vpop.f32.mrb[0].mxu0
    %v350 = vadd.f32 %v177, %v349
    %v351 = vpop.f32.mrb[0].mxu0
    %v352 = vadd.f32 %v181, %v351
    %353 = vmatprep.mubr.f32.mxu0 0.0
    %354 = vmatmul.mubr.f32.gmra.mrb[0].mxu0 %v30
    %v355 = vpop.f32.mrb[0].mxu0
    %v356 = vadd.f32 %v177, %v355
    %v357 = vpop.f32.mrb[0].mxu0
    %v358 = vadd.f32 %v181, %v357
    %359 = vdwg.mxu0
    %360 = vmatprep.subr.mxu0 %v40
    %361 = vmatpush1.msra.mxu0 %v39
    %362 = vmatprep.subr.mxu0 %v48
    %363 = vmatpush1.msra.mxu0 %v47
    %364 = vmatprep.subr.mxu0 %v56
    %365 = vmatpush1.msra.mxu0 %v55
    %366 = vmatprep.subr.mxu0 %v64
    %367 = vmatpush1.msra.mxu0 %v63
    %368 = vmatprep.subr.mxu0 %v72
    %369 = vmatpush1.msra.mxu0 %v71
    %370 = vmatprep.subr.mxu0 %v80
    %371 = vmatpush1.msra.mxu0 %v79
    %372 = vmatprep.subr.mxu0 %v88
    %373 = vmatpush1.msra.mxu0 %v87
    %374 = vmatprep.subr.mxu0 %v96
    %375 = vmatpush1.msra.mxu0 %v95
    %376 = vmatprep.subr.mxu0 %v104
    %377 = vmatpush1.msra.mxu0 %v103
    %378 = vmatprep.subr.mxu0 %v112
    %379 = vmatpush1.msra.mxu0 %v111
    %380 = vmatprep.subr.mxu0 %v120
    %381 = vmatpush1.msra.mxu0 %v119
    %382 = vmatprep.subr.mxu0 %v128
    %383 = vmatpush1.msra.mxu0 %v127
    %384 = vmatprep.subr.mxu0 %v136
    %385 = vmatpush1.msra.mxu0 %v135
    %386 = vmatprep.subr.mxu0 %v144
    %387 = vmatpush1.msra.mxu0 %v143
    %388 = vmatprep.subr.mxu0 %v152
    %389 = vmatpush1.msra.mxu0 %v151
    %390 = vmatprep.subr.mxu0 %v160
    %391 = vmatpush1.msra.mxu0 %v159
    %392 = vmatprep.subr.mxu0 0.0
    %393 = vmatpush1.msra.mxu0 0.0
    %394 = vmatprep.subr.mxu0 0.0
    %395 = vmatpush1.msra.mxu0 0.0
    %396 = vmatprep.subr.mxu0 0.0
    %397 = vmatpush1.msra.mxu0 0.0
    %398 = vmatprep.subr.mxu0 0.0
    %399 = vmatpush1.msra.mxu0 0.0
    %400 = vmatprep.subr.mxu0 0.0
    %401 = vmatpush1.msra.mxu0 0.0
    %402 = vmatprep.subr.mxu0 0.0
    %403 = vmatpush1.msra.mxu0 0.0
    %404 = vmatprep.subr.mxu0 0.0
    %405 = vmatpush1.msra.mxu0 0.0
    %406 = vmatprep.subr.mxu0 0.0
    %407 = vmatpush1.msra.mxu0 0.0
    %408 = vmatprep.subr.mxu0 0.0
    %409 = vmatpush1.msra.mxu0 0.0
    %410 = vmatprep.subr.mxu0 0.0
    %411 = vmatpush1.msra.mxu0 0.0
    %412 = vmatprep.subr.mxu0 0.0
    %413 = vmatpush1.msra.mxu0 0.0
    %414 = vmatprep.subr.mxu0 0.0
    %415 = vmatpush1.msra.mxu0 0.0
    %416 = vmatprep.subr.mxu0 0.0
    %417 = vmatpush1.msra.mxu0 0.0
    %418 = vmatprep.subr.mxu0 0.0
    %419 = vmatpush1.msra.mxu0 0.0
    %420 = vmatprep.subr.mxu0 0.0
    %421 = vmatpush1.msra.mxu0 0.0
    %422 = vmatprep.subr.mxu0 0.0
    %423 = vmatpush1.msra.mxu0 0.0
    %424 = vmatprep.mubr.f32.mxu0 0.0
    %425 = vmatmul.mubr.f32.gmra.mrb[0].mxu0 %v29
    %v426 = vpop.f32.mrb[0].mxu0
    %v427 = vadd.f32 %v185, %v426
    %v428 = vpop.f32.mrb[0].mxu0
    %v429 = vadd.f32 %v189, %v428
    %430 = vmatprep.mubr.f32.mxu0 0.0
    %431 = vmatmul.mubr.f32.gmra.mrb[0].mxu0 %v30
    %v432 = vpop.f32.mrb[0].mxu0
    %v433 = vadd.f32 %v185, %v432
    %v434 = vpop.f32.mrb[0].mxu0
    %v435 = vadd.f32 %v189, %v434
    %436 = vdwg.mxu0
    %437 = vmatprep.subr.mxu0 %v42
    %438 = vmatpush1.msra.mxu0 %v41
    %439 = vmatprep.subr.mxu0 %v50
    %440 = vmatpush1.msra.mxu0 %v49
    %441 = vmatprep.subr.mxu0 %v58
    %442 = vmatpush1.msra.mxu0 %v57
    %443 = vmatprep.subr.mxu0 %v66
    %444 = vmatpush1.msra.mxu0 %v65
    %445 = vmatprep.subr.mxu0 %v74
    %446 = vmatpush1.msra.mxu0 %v73
    %447 = vmatprep.subr.mxu0 %v82
    %448 = vmatpush1.msra.mxu0 %v81
    %449 = vmatprep.subr.mxu0 %v90
    %450 = vmatpush1.msra.mxu0 %v89
    %451 = vmatprep.subr.mxu0 %v98
    %452 = vmatpush1.msra.mxu0 %v97
    %453 = vmatprep.subr.mxu0 %v106
    %454 = vmatpush1.msra.mxu0 %v105
    %455 = vmatprep.subr.mxu0 %v114
    %456 = vmatpush1.msra.mxu0 %v113
    %457 = vmatprep.subr.mxu0 %v122
    %458 = vmatpush1.msra.mxu0 %v121
    %459 = vmatprep.subr.mxu0 %v130
    %460 = vmatpush1.msra.mxu0 %v129
    %461 = vmatprep.subr.mxu0 %v138
    %462 = vmatpush1.msra.mxu0 %v137
    %463 = vmatprep.subr.mxu0 %v146
    %464 = vmatpush1.msra.mxu0 %v145
    %465 = vmatprep.subr.mxu0 %v154
    %466 = vmatpush1.msra.mxu0 %v153
    %467 = vmatprep.subr.mxu0 %v162
    %468 = vmatpush1.msra.mxu0 %v161
    %469 = vmatprep.subr.mxu0 0.0
    %470 = vmatpush1.msra.mxu0 0.0
    %471 = vmatprep.subr.mxu0 0.0
    %472 = vmatpush1.msra.mxu0 0.0
    %473 = vmatprep.subr.mxu0 0.0
    %474 = vmatpush1.msra.mxu0 0.0
    %475 = vmatprep.subr.mxu0 0.0
    %476 = vmatpush1.msra.mxu0 0.0
    %477 = vmatprep.subr.mxu0 0.0
    %478 = vmatpush1.msra.mxu0 0.0
    %479 = vmatprep.subr.mxu0 0.0
    %480 = vmatpush1.msra.mxu0 0.0
    %481 = vmatprep.subr.mxu0 0.0
    %482 = vmatpush1.msra.mxu0 0.0
    %483 = vmatprep.subr.mxu0 0.0
    %484 = vmatpush1.msra.mxu0 0.0
    %485 = vmatprep.subr.mxu0 0.0
    %486 = vmatpush1.msra.mxu0 0.0
    %487 = vmatprep.subr.mxu0 0.0
    %488 = vmatpush1.msra.mxu0 0.0
    %489 = vmatprep.subr.mxu0 0.0
    %490 = vmatpush1.msra.mxu0 0.0
    %491 = vmatprep.subr.mxu0 0.0
    %492 = vmatpush1.msra.mxu0 0.0
    %493 = vmatprep.subr.mxu0 0.0
    %494 = vmatpush1.msra.mxu0 0.0
    %495 = vmatprep.subr.mxu0 0.0
    %496 = vmatpush1.msra.mxu0 0.0
    %497 = vmatprep.subr.mxu0 0.0
    %498 = vmatpush1.msra.mxu0 0.0
    %499 = vmatprep.subr.mxu0 0.0
    %500 = vmatpush1.msra.mxu0 0.0
    %501 = vmatprep.mubr.f32.mxu0 0.0
    %502 = vmatmul.mubr.f32.gmra.mrb[0].mxu0 %v29
    %v503 = vpop.f32.mrb[0].mxu0
    %v504 = vadd.f32 %v193, %v503
    %v505 = vpop.f32.mrb[0].mxu0
    %v506 = vadd.f32 %v197, %v505
    %507 = vmatprep.mubr.f32.mxu0 0.0
    %508 = vmatmul.mubr.f32.gmra.mrb[0].mxu0 %v30
    %v509 = vpop.f32.mrb[0].mxu0
    %v510 = vadd.f32 %v193, %v509
    %v511 = vpop.f32.mrb[0].mxu0
    %v512 = vadd.f32 %v197, %v511
    %513 = vdwg.mxu0
    %v514 = vmax.f32 %v273, 0.0
    %v515 = vmax.f32 %v275, 0.0
    %v516 = vmax.f32 %v350, 0.0
    %v517 = vmax.f32 %v352, 0.0
    %v518 = vmax.f32 %v427, 0.0
    %v519 = vmax.f32 %v429, 0.0
    %v520 = vmax.f32 %v504, 0.0
    %v521 = vmax.f32 %v506, 0.0
    %v522 = vmax.f32 %v279, 0.0
    %v523 = vmax.f32 %v281, 0.0
    %v524 = vmax.f32 %v356, 0.0
    %v525 = vmax.f32 %v358, 0.0
    %v526 = vmax.f32 %v433, 0.0
    %v527 = vmax.f32 %v435, 0.0
    %v528 = vmax.f32 %v510, 0.0
    %v529 = vmax.f32 %v512, 0.0
    %v530 = vld [vmem:[#allocation2] sm:$0xff]
    %v531 = vld [vmem:[#allocation2 + $0x8] sm:$0xff]
    %s532 = scalar_lea.vmem %s3, %s28
    %v533 = vld [vmem:[%s532] sm:$0xff]
    %v534 = vld [vmem:[%s532 + $0x8] sm:$0xff]
    %v535 = vld [vmem:[%s532 + $0x10] sm:$0xff]
    %v536 = vld [vmem:[%s532 + $0x18] sm:$0xff]
    %v537 = vld [vmem:[%s532 + $0x20] sm:$0xff]
    %v538 = vld [vmem:[%s532 + $0x28] sm:$0xff]
    %v539 = vld [vmem:[%s532 + $0x30] sm:$0xff]
    %v540 = vld [vmem:[%s532 + $0x38] sm:$0xff]
    %v541 = vld [vmem:[%s532 + $0x40] sm:$0xff]
    %v542 = vld [vmem:[%s532 + $0x48] sm:$0xff]
    %v543 = vld [vmem:[%s532 + $0x50] sm:$0xff]
    %v544 = vld [vmem:[%s532 + $0x58] sm:$0xff]
    %v545 = vld [vmem:[%s532 + $0x60] sm:$0xff]
    %v546 = vld [vmem:[%s532 + $0x68] sm:$0xff]
    %v547 = vld [vmem:[%s532 + $0x70] sm:$0xff]
    %v548 = vld [vmem:[%s532 + $0x78] sm:$0xff]
    %v549 = vld [vmem:[%s532 + $0x80] sm:$0xff]
    %v550 = vld [vmem:[%s532 + $0x88] sm:$0xff]
    %v551 = vld [vmem:[%s532 + $0x90] sm:$0xff]
    %v552 = vld [vmem:[%s532 + $0x98] sm:$0xff]
    %v553 = vld [vmem:[%s532 + $0xa0] sm:$0xff]
    %v554 = vld [vmem:[%s532 + $0xa8] sm:$0xff]
    %v555 = vld [vmem:[%s532 + $0xb0] sm:$0xff]
    %v556 = vld [vmem:[%s532 + $0xb8] sm:$0xff]
    %v557 = vld [vmem:[%s532 + $0xc0] sm:$0xff]
    %v558 = vld [vmem:[%s532 + $0xc8] sm:$0xff]
    %v559 = vld [vmem:[%s532 + $0xd0] sm:$0xff]
    %v560 = vld [vmem:[%s532 + $0xd8] sm:$0xff]
    %v561 = vld [vmem:[%s532 + $0xe0] sm:$0xff]
    %v562 = vld [vmem:[%s532 + $0xe8] sm:$0xff]
    %v563 = vld [vmem:[%s532 + $0xf0] sm:$0xff]
    %v564 = vld [vmem:[%s532 + $0xf8] sm:$0xff]
    %v565 = vld [vmem:[%s532 + $0x100] sm:$0xff]
    %v566 = vld [vmem:[%s532 + $0x108] sm:$0xff]
    %v567 = vld [vmem:[%s532 + $0x110] sm:$0xff]
    %v568 = vld [vmem:[%s532 + $0x118] sm:$0xff]
    %v569 = vld [vmem:[%s532 + $0x120] sm:$0xff]
    %v570 = vld [vmem:[%s532 + $0x128] sm:$0xff]
    %v571 = vld [vmem:[%s532 + $0x130] sm:$0xff]
    %v572 = vld [vmem:[%s532 + $0x138] sm:$0xff]
    %v573 = vld [vmem:[%s532 + $0x140] sm:$0xff]
    %v574 = vld [vmem:[%s532 + $0x148] sm:$0xff]
    %v575 = vld [vmem:[%s532 + $0x150] sm:$0xff]
    %v576 = vld [vmem:[%s532 + $0x158] sm:$0xff]
    %v577 = vld [vmem:[%s532 + $0x160] sm:$0xff]
    %v578 = vld [vmem:[%s532 + $0x168] sm:$0xff]
    %v579 = vld [vmem:[%s532 + $0x170] sm:$0xff]
    %v580 = vld [vmem:[%s532 + $0x178] sm:$0xff]
    %v581 = vld [vmem:[%s532 + $0x180] sm:$0xff]
    %v582 = vld [vmem:[%s532 + $0x188] sm:$0xff]
    %v583 = vld [vmem:[%s532 + $0x190] sm:$0xff]
    %v584 = vld [vmem:[%s532 + $0x198] sm:$0xff]
    %v585 = vld [vmem:[%s532 + $0x1a0] sm:$0xff]
    %v586 = vld [vmem:[%s532 + $0x1a8] sm:$0xff]
    %v587 = vld [vmem:[%s532 + $0x1b0] sm:$0xff]
    %v588 = vld [vmem:[%s532 + $0x1b8] sm:$0xff]
    %v589 = vld [vmem:[%s532 + $0x1c0] sm:$0xff]
    %v590 = vld [vmem:[%s532 + $0x1c8] sm:$0xff]
    %v591 = vld [vmem:[%s532 + $0x1d0] sm:$0xff]
    %v592 = vld [vmem:[%s532 + $0x1d8] sm:$0xff]
    %v593 = vld [vmem:[%s532 + $0x1e0] sm:$0xff]
    %v594 = vld [vmem:[%s532 + $0x1e8] sm:$0xff]
    %v595 = vld [vmem:[%s532 + $0x1f0] sm:$0xff]
    %v596 = vld [vmem:[%s532 + $0x1f8] sm:$0xff]
    %v597 = vld [vmem:[%s532 + $0x200] sm:$0xff]
    %v598 = vld [vmem:[%s532 + $0x208] sm:$0xff]
    %v599 = vld [vmem:[%s532 + $0x210] sm:$0xff]
    %v600 = vld [vmem:[%s532 + $0x218] sm:$0xff]
    %v601 = vld [vmem:[%s532 + $0x220] sm:$0xff]
    %v602 = vld [vmem:[%s532 + $0x228] sm:$0xff]
    %v603 = vld [vmem:[%s532 + $0x230] sm:$0xff]
    %v604 = vld [vmem:[%s532 + $0x238] sm:$0xff]
    %v605 = vld [vmem:[%s532 + $0x240] sm:$0xff]
    %v606 = vld [vmem:[%s532 + $0x248] sm:$0xff]
    %v607 = vld [vmem:[%s532 + $0x250] sm:$0xff]
    %v608 = vld [vmem:[%s532 + $0x258] sm:$0xff]
    %v609 = vld [vmem:[%s532 + $0x260] sm:$0xff]
    %v610 = vld [vmem:[%s532 + $0x268] sm:$0xff]
    %v611 = vld [vmem:[%s532 + $0x270] sm:$0xff]
    %v612 = vld [vmem:[%s532 + $0x278] sm:$0xff]
    %v613 = vld [vmem:[%s532 + $0x280] sm:$0xff]
    %v614 = vld [vmem:[%s532 + $0x288] sm:$0xff]
    %v615 = vld [vmem:[%s532 + $0x290] sm:$0xff]
    %v616 = vld [vmem:[%s532 + $0x298] sm:$0xff]
    %v617 = vld [vmem:[%s532 + $0x2a0] sm:$0xff]
    %v618 = vld [vmem:[%s532 + $0x2a8] sm:$0xff]
    %v619 = vld [vmem:[%s532 + $0x2b0] sm:$0xff]
    %v620 = vld [vmem:[%s532 + $0x2b8] sm:$0xff]
    %v621 = vld [vmem:[%s532 + $0x2c0] sm:$0xff]
    %v622 = vld [vmem:[%s532 + $0x2c8] sm:$0xff]
    %v623 = vld [vmem:[%s532 + $0x2d0] sm:$0xff]
    %v624 = vld [vmem:[%s532 + $0x2d8] sm:$0xff]
    %v625 = vld [vmem:[%s532 + $0x2e0] sm:$0xff]
    %v626 = vld [vmem:[%s532 + $0x2e8] sm:$0xff]
    %v627 = vld [vmem:[%s532 + $0x2f0] sm:$0xff]
    %v628 = vld [vmem:[%s532 + $0x2f8] sm:$0xff]
    %v629 = vld [vmem:[%s532 + $0x300] sm:$0xff]
    %v630 = vld [vmem:[%s532 + $0x308] sm:$0xff]
    %v631 = vld [vmem:[%s532 + $0x310] sm:$0xff]
    %v632 = vld [vmem:[%s532 + $0x318] sm:$0xff]
    %v633 = vld [vmem:[%s532 + $0x320] sm:$0xff]
    %v634 = vld [vmem:[%s532 + $0x328] sm:$0xff]
    %v635 = vld [vmem:[%s532 + $0x330] sm:$0xff]
    %v636 = vld [vmem:[%s532 + $0x338] sm:$0xff]
    %v637 = vld [vmem:[%s532 + $0x340] sm:$0xff]
    %v638 = vld [vmem:[%s532 + $0x348] sm:$0xff]
    %v639 = vld [vmem:[%s532 + $0x350] sm:$0xff]
    %v640 = vld [vmem:[%s532 + $0x358] sm:$0xff]
    %v641 = vld [vmem:[%s532 + $0x360] sm:$0xff]
    %v642 = vld [vmem:[%s532 + $0x368] sm:$0xff]
    %v643 = vld [vmem:[%s532 + $0x370] sm:$0xff]
    %v644 = vld [vmem:[%s532 + $0x378] sm:$0xff]
    %v645 = vld [vmem:[%s532 + $0x380] sm:$0xff]
    %v646 = vld [vmem:[%s532 + $0x388] sm:$0xff]
    %v647 = vld [vmem:[%s532 + $0x390] sm:$0xff]
    %v648 = vld [vmem:[%s532 + $0x398] sm:$0xff]
    %v649 = vld [vmem:[%s532 + $0x3a0] sm:$0xff]
    %v650 = vld [vmem:[%s532 + $0x3a8] sm:$0xff]
    %v651 = vld [vmem:[%s532 + $0x3b0] sm:$0xff]
    %v652 = vld [vmem:[%s532 + $0x3b8] sm:$0xff]
    %v653 = vld [vmem:[%s532 + $0x3c0] sm:$0xff]
    %v654 = vld [vmem:[%s532 + $0x3c8] sm:$0xff]
    %v655 = vld [vmem:[%s532 + $0x3d0] sm:$0xff]
    %v656 = vld [vmem:[%s532 + $0x3d8] sm:$0xff]
    %v657 = vld [vmem:[%s532 + $0x3e0] sm:$0xff]
    %v658 = vld [vmem:[%s532 + $0x3e8] sm:$0xff]
    %v659 = vld [vmem:[%s532 + $0x3f0] sm:$0xff]
    %v660 = vld [vmem:[%s532 + $0x3f8] sm:$0xff]
    %661 = vmatprep.subr.mxu0 0.0
    %662 = vmatpush1.msra.mxu0 %v533
    %663 = vmatprep.subr.mxu0 0.0
    %664 = vmatpush1.msra.mxu0 %v534
    %665 = vmatprep.subr.mxu0 0.0
    %666 = vmatpush1.msra.mxu0 %v535
    %667 = vmatprep.subr.mxu0 0.0
    %668 = vmatpush1.msra.mxu0 %v536
    %669 = vmatprep.subr.mxu0 0.0
    %670 = vmatpush1.msra.mxu0 %v537
    %671 = vmatprep.subr.mxu0 0.0
    %672 = vmatpush1.msra.mxu0 %v538
    %673 = vmatprep.subr.mxu0 0.0
    %674 = vmatpush1.msra.mxu0 %v539
    %675 = vmatprep.subr.mxu0 0.0
    %676 = vmatpush1.msra.mxu0 %v540
    %677 = vmatprep.subr.mxu0 0.0
    %678 = vmatpush1.msra.mxu0 %v541
    %679 = vmatprep.subr.mxu0 0.0
    %680 = vmatpush1.msra.mxu0 %v542
    %681 = vmatprep.subr.mxu0 0.0
    %682 = vmatpush1.msra.mxu0 %v543
    %683 = vmatprep.subr.mxu0 0.0
    %684 = vmatpush1.msra.mxu0 %v544
    %685 = vmatprep.subr.mxu0 0.0
    %686 = vmatpush1.msra.mxu0 %v545
    %687 = vmatprep.subr.mxu0 0.0
    %688 = vmatpush1.msra.mxu0 %v546
    %689 = vmatprep.subr.mxu0 0.0
    %690 = vmatpush1.msra.mxu0 %v547
    %691 = vmatprep.subr.mxu0 0.0
    %692 = vmatpush1.msra.mxu0 %v548
    %693 = vmatprep.subr.mxu0 0.0
    %694 = vmatpush1.msra.mxu0 %v549
    %695 = vmatprep.subr.mxu0 0.0
    %696 = vmatpush1.msra.mxu0 %v550
    %697 = vmatprep.subr.mxu0 0.0
    %698 = vmatpush1.msra.mxu0 %v551
    %699 = vmatprep.subr.mxu0 0.0
    %700 = vmatpush1.msra.mxu0 %v552
    %701 = vmatprep.subr.mxu0 0.0
    %702 = vmatpush1.msra.mxu0 %v553
    %703 = vmatprep.subr.mxu0 0.0
    %704 = vmatpush1.msra.mxu0 %v554
    %705 = vmatprep.subr.mxu0 0.0
    %706 = vmatpush1.msra.mxu0 %v555
    %707 = vmatprep.subr.mxu0 0.0
    %708 = vmatpush1.msra.mxu0 %v556
    %709 = vmatprep.subr.mxu0 0.0
    %710 = vmatpush1.msra.mxu0 %v557
    %711 = vmatprep.subr.mxu0 0.0
    %712 = vmatpush1.msra.mxu0 %v558
    %713 = vmatprep.subr.mxu0 0.0
    %714 = vmatpush1.msra.mxu0 %v559
    %715 = vmatprep.subr.mxu0 0.0
    %716 = vmatpush1.msra.mxu0 %v560
    %717 = vmatprep.subr.mxu0 0.0
    %718 = vmatpush1.msra.mxu0 %v561
    %719 = vmatprep.subr.mxu0 0.0
    %720 = vmatpush1.msra.mxu0 %v562
    %721 = vmatprep.subr.mxu0 0.0
    %722 = vmatpush1.msra.mxu0 %v563
    %723 = vmatprep.subr.mxu0 0.0
    %724 = vmatpush1.msra.mxu0 %v564
    %725 = vmatprep.mubr.f32.mxu0 %v515
    %726 = vmatmul.mubr.f32.gmra.mrb[0].mxu0 %v514
    %v727 = vpop.f32.mrb[0].mxu0
    %v728 = vadd.f32 0.0, %v727
    %v729 = vpop.f32.mrb[0].mxu0
    %730 = vmatprep.mubr.f32.mxu0 %v523
    %731 = vmatmul.mubr.f32.gmra.mrb[0].mxu0 %v522
    %v732 = vpop.f32.mrb[0].mxu0
    %v733 = vadd.f32 0.0, %v732
    %v734 = vpop.f32.mrb[0].mxu0
    %735 = vdwg.mxu0
    %736 = vmatprep.subr.mxu0 0.0
    %737 = vmatpush1.msra.mxu0 %v565
    %738 = vmatprep.subr.mxu0 0.0
    %739 = vmatpush1.msra.mxu0 %v566
    %740 = vmatprep.subr.mxu0 0.0
    %741 = vmatpush1.msra.mxu0 %v567
    %742 = vmatprep.subr.mxu0 0.0
    %743 = vmatpush1.msra.mxu0 %v568
    %744 = vmatprep.subr.mxu0 0.0
    %745 = vmatpush1.msra.mxu0 %v569
    %746 = vmatprep.subr.mxu0 0.0
    %747 = vmatpush1.msra.mxu0 %v570
    %748 = vmatprep.subr.mxu0 0.0
    %749 = vmatpush1.msra.mxu0 %v571
    %750 = vmatprep.subr.mxu0 0.0
    %751 = vmatpush1.msra.mxu0 %v572
    %752 = vmatprep.subr.mxu0 0.0
    %753 = vmatpush1.msra.mxu0 %v573
    %754 = vmatprep.subr.mxu0 0.0
    %755 = vmatpush1.msra.mxu0 %v574
    %756 = vmatprep.subr.mxu0 0.0
    %757 = vmatpush1.msra.mxu0 %v575
    %758 = vmatprep.subr.mxu0 0.0
    %759 = vmatpush1.msra.mxu0 %v576
    %760 = vmatprep.subr.mxu0 0.0
    %761 = vmatpush1.msra.mxu0 %v577
    %762 = vmatprep.subr.mxu0 0.0
    %763 = vmatpush1.msra.mxu0 %v578
    %764 = vmatprep.subr.mxu0 0.0
    %765 = vmatpush1.msra.mxu0 %v579
    %766 = vmatprep.subr.mxu0 0.0
    %767 = vmatpush1.msra.mxu0 %v580
    %768 = vmatprep.subr.mxu0 0.0
    %769 = vmatpush1.msra.mxu0 %v581
    %770 = vmatprep.subr.mxu0 0.0
    %771 = vmatpush1.msra.mxu0 %v582
    %772 = vmatprep.subr.mxu0 0.0
    %773 = vmatpush1.msra.mxu0 %v583
    %774 = vmatprep.subr.mxu0 0.0
    %775 = vmatpush1.msra.mxu0 %v584
    %776 = vmatprep.subr.mxu0 0.0
    %777 = vmatpush1.msra.mxu0 %v585
    %778 = vmatprep.subr.mxu0 0.0
    %779 = vmatpush1.msra.mxu0 %v586
    %780 = vmatprep.subr.mxu0 0.0
    %781 = vmatpush1.msra.mxu0 %v587
    %782 = vmatprep.subr.mxu0 0.0
    %783 = vmatpush1.msra.mxu0 %v588
    %784 = vmatprep.subr.mxu0 0.0
    %785 = vmatpush1.msra.mxu0 %v589
    %786 = vmatprep.subr.mxu0 0.0
    %787 = vmatpush1.msra.mxu0 %v590
    %788 = vmatprep.subr.mxu0 0.0
    %789 = vmatpush1.msra.mxu0 %v591
    %790 = vmatprep.subr.mxu0 0.0
    %791 = vmatpush1.msra.mxu0 %v592
    %792 = vmatprep.subr.mxu0 0.0
    %793 = vmatpush1.msra.mxu0 %v593
    %794 = vmatprep.subr.mxu0 0.0
    %795 = vmatpush1.msra.mxu0 %v594
    %796 = vmatprep.subr.mxu0 0.0
    %797 = vmatpush1.msra.mxu0 %v595
    %798 = vmatprep.subr.mxu0 0.0
    %799 = vmatpush1.msra.mxu0 %v596
    %800 = vmatprep.mubr.f32.mxu0 %v517
    %801 = vmatmul.mubr.f32.gmra.mrb[0].mxu0 %v516
    %v802 = vpop.f32.mrb[0].mxu0
    %v803 = vadd.f32 %v728, %v802
    %v804 = vpop.f32.mrb[0].mxu0
    %805 = vmatprep.mubr.f32.mxu0 %v525
    %806 = vmatmul.mubr.f32.gmra.mrb[0].mxu0 %v524
    %v807 = vpop.f32.mrb[0].mxu0
    %v808 = vadd.f32 %v733, %v807
    %v809 = vpop.f32.mrb[0].mxu0
    %810 = vdwg.mxu0
    %811 = vmatprep.subr.mxu0 0.0
    %812 = vmatpush1.msra.mxu0 %v597
    %813 = vmatprep.subr.mxu0 0.0
    %814 = vmatpush1.msra.mxu0 %v598
    %815 = vmatprep.subr.mxu0 0.0
    %816 = vmatpush1.msra.mxu0 %v599
    %817 = vmatprep.subr.mxu0 0.0
    %818 = vmatpush1.msra.mxu0 %v600
    %819 = vmatprep.subr.mxu0 0.0
    %820 = vmatpush1.msra.mxu0 %v601
    %821 = vmatprep.subr.mxu0 0.0
    %822 = vmatpush1.msra.mxu0 %v602
    %823 = vmatprep.subr.mxu0 0.0
    %824 = vmatpush1.msra.mxu0 %v603
    %825 = vmatprep.subr.mxu0 0.0
    %826 = vmatpush1.msra.mxu0 %v604
    %827 = vmatprep.subr.mxu0 0.0
    %828 = vmatpush1.msra.mxu0 %v605
    %829 = vmatprep.subr.mxu0 0.0
    %830 = vmatpush1.msra.mxu0 %v606
    %831 = vmatprep.subr.mxu0 0.0
    %832 = vmatpush1.msra.mxu0 %v607
    %833 = vmatprep.subr.mxu0 0.0
    %834 = vmatpush1.msra.mxu0 %v608
    %835 = vmatprep.subr.mxu0 0.0
    %836 = vmatpush1.msra.mxu0 %v609
    %837 = vmatprep.subr.mxu0 0.0
    %838 = vmatpush1.msra.mxu0 %v610
    %839 = vmatprep.subr.mxu0 0.0
    %840 = vmatpush1.msra.mxu0 %v611
    %841 = vmatprep.subr.mxu0 0.0
    %842 = vmatpush1.msra.mxu0 %v612
    %843 = vmatprep.subr.mxu0 0.0
    %844 = vmatpush1.msra.mxu0 %v613
    %845 = vmatprep.subr.mxu0 0.0
    %846 = vmatpush1.msra.mxu0 %v614
    %847 = vmatprep.subr.mxu0 0.0
    %848 = vmatpush1.msra.mxu0 %v615
    %849 = vmatprep.subr.mxu0 0.0
    %850 = vmatpush1.msra.mxu0 %v616
    %851 = vmatprep.subr.mxu0 0.0
    %852 = vmatpush1.msra.mxu0 %v617
    %853 = vmatprep.subr.mxu0 0.0
    %854 = vmatpush1.msra.mxu0 %v618
    %855 = vmatprep.subr.mxu0 0.0
    %856 = vmatpush1.msra.mxu0 %v619
    %857 = vmatprep.subr.mxu0 0.0
    %858 = vmatpush1.msra.mxu0 %v620
    %859 = vmatprep.subr.mxu0 0.0
    %860 = vmatpush1.msra.mxu0 %v621
    %861 = vmatprep.subr.mxu0 0.0
    %862 = vmatpush1.msra.mxu0 %v622
    %863 = vmatprep.subr.mxu0 0.0
    %864 = vmatpush1.msra.mxu0 %v623
    %865 = vmatprep.subr.mxu0 0.0
    %866 = vmatpush1.msra.mxu0 %v624
    %867 = vmatprep.subr.mxu0 0.0
    %868 = vmatpush1.msra.mxu0 %v625
    %869 = vmatprep.subr.mxu0 0.0
    %870 = vmatpush1.msra.mxu0 %v626
    %871 = vmatprep.subr.mxu0 0.0
    %872 = vmatpush1.msra.mxu0 %v627
    %873 = vmatprep.subr.mxu0 0.0
    %874 = vmatpush1.msra.mxu0 %v628
    %875 = vmatprep.mubr.f32.mxu0 %v519
    %876 = vmatmul.mubr.f32.gmra.mrb[0].mxu0 %v518
    %v877 = vpop.f32.mrb[0].mxu0
    %v878 = vadd.f32 %v803, %v877
    %v879 = vpop.f32.mrb[0].mxu0
    %880 = vmatprep.mubr.f32.mxu0 %v527
    %881 = vmatmul.mubr.f32.gmra.mrb[0].mxu0 %v526
    %v882 = vpop.f32.mrb[0].mxu0
    %v883 = vadd.f32 %v808, %v882
    %v884 = vpop.f32.mrb[0].mxu0
    %885 = vdwg.mxu0
    %886 = vmatprep.subr.mxu0 0.0
    %887 = vmatpush1.msra.mxu0 %v629
    %888 = vmatprep.subr.mxu0 0.0
    %889 = vmatpush1.msra.mxu0 %v630
    %890 = vmatprep.subr.mxu0 0.0
    %891 = vmatpush1.msra.mxu0 %v631
    %892 = vmatprep.subr.mxu0 0.0
    %893 = vmatpush1.msra.mxu0 %v632
    %894 = vmatprep.subr.mxu0 0.0
    %895 = vmatpush1.msra.mxu0 %v633
    %896 = vmatprep.subr.mxu0 0.0
    %897 = vmatpush1.msra.mxu0 %v634
    %898 = vmatprep.subr.mxu0 0.0
    %899 = vmatpush1.msra.mxu0 %v635
    %900 = vmatprep.subr.mxu0 0.0
    %901 = vmatpush1.msra.mxu0 %v636
    %902 = vmatprep.subr.mxu0 0.0
    %903 = vmatpush1.msra.mxu0 %v637
    %904 = vmatprep.subr.mxu0 0.0
    %905 = vmatpush1.msra.mxu0 %v638
    %906 = vmatprep.subr.mxu0 0.0
    %907 = vmatpush1.msra.mxu0 %v639
    %908 = vmatprep.subr.mxu0 0.0
    %909 = vmatpush1.msra.mxu0 %v640
    %910 = vmatprep.subr.mxu0 0.0
    %911 = vmatpush1.msra.mxu0 %v641
    %912 = vmatprep.subr.mxu0 0.0
    %913 = vmatpush1.msra.mxu0 %v642
    %914 = vmatprep.subr.mxu0 0.0
    %915 = vmatpush1.msra.mxu0 %v643
    %916 = vmatprep.subr.mxu0 0.0
    %917 = vmatpush1.msra.mxu0 %v644
    %918 = vmatprep.subr.mxu0 0.0
    %919 = vmatpush1.msra.mxu0 %v645
    %920 = vmatprep.subr.mxu0 0.0
    %921 = vmatpush1.msra.mxu0 %v646
    %922 = vmatprep.subr.mxu0 0.0
    %923 = vmatpush1.msra.mxu0 %v647
    %924 = vmatprep.subr.mxu0 0.0
    %925 = vmatpush1.msra.mxu0 %v648
    %926 = vmatprep.subr.mxu0 0.0
    %927 = vmatpush1.msra.mxu0 %v649
    %928 = vmatprep.subr.mxu0 0.0
    %929 = vmatpush1.msra.mxu0 %v650
    %930 = vmatprep.subr.mxu0 0.0
    %931 = vmatpush1.msra.mxu0 %v651
    %932 = vmatprep.subr.mxu0 0.0
    %933 = vmatpush1.msra.mxu0 %v652
    %934 = vmatprep.subr.mxu0 0.0
    %935 = vmatpush1.msra.mxu0 %v653
    %936 = vmatprep.subr.mxu0 0.0
    %937 = vmatpush1.msra.mxu0 %v654
    %938 = vmatprep.subr.mxu0 0.0
    %939 = vmatpush1.msra.mxu0 %v655
    %940 = vmatprep.subr.mxu0 0.0
    %941 = vmatpush1.msra.mxu0 %v656
    %942 = vmatprep.subr.mxu0 0.0
    %943 = vmatpush1.msra.mxu0 %v657
    %944 = vmatprep.subr.mxu0 0.0
    %945 = vmatpush1.msra.mxu0 %v658
    %946 = vmatprep.subr.mxu0 0.0
    %947 = vmatpush1.msra.mxu0 %v659
    %948 = vmatprep.subr.mxu0 0.0
    %949 = vmatpush1.msra.mxu0 %v660
    %950 = vmatprep.mubr.f32.mxu0 %v521
    %951 = vmatmul.mubr.f32.gmra.mrb[0].mxu0 %v520
    %v952 = vpop.f32.mrb[0].mxu0
    %v953 = vadd.f32 %v878, %v952
    %v954 = vpop.f32.mrb[0].mxu0
    %955 = vmatprep.mubr.f32.mxu0 %v529
    %956 = vmatmul.mubr.f32.gmra.mrb[0].mxu0 %v528
    %v957 = vpop.f32.mrb[0].mxu0
    %v958 = vadd.f32 %v883, %v957
    %v959 = vpop.f32.mrb[0].mxu0
    %960 = vdwg.mxu0
    %v961 = vadd.f32 %v530, %v953
    %v962 = vadd.f32 %v531, %v958
    %963 = vst [vmem:[#allocation2] sm:$0xff] %v961
    %964 = vst [vmem:[#allocation2 + $0x8] sm:$0xff] %v962
  $region26: #{feed_forward.1} parent=0 // loop_footer
    %s27 = sadd.s32 1, %s23
  $region27: #{feed_forward.1} parent=0 // loop_footer_branch
    %22 = sbr.rel target = $region23
  $region28: #{feed_forward.1} parent=0 // loop_exit
    _
  %v965 = vld [vmem:[#allocation2] sm:$0xff]
  %v966 = vld [vmem:[#allocation2 + $0x8] sm:$0xff]
  %v967 = vld [vmem:[%s4] sm:$0x1]
  %v969 = vlaneseq
  %v970 = vshrl.u32 %v969, 7
  %v971 = vsub.s32 0, %v970
  %v972 = vrot.slane %v967, %v971
  %v974 = vadd.f32 %v965, %v972
  %v975 = vadd.f32 %v966, %v972
  %976 = vst [vmem:[%s5] sm:$0xff] %v974
  %977 = vst [vmem:[%s5 + $0x8] sm:$0xff] %v975
  // Predicated region
  $region29: #{feed_forward.1} parent=0 // pred_check
    _
  $region30: #{feed_forward.1} parent=0 // pred_check_branch
    %979 = sbr.rel (0) target = $region32
  $region31: #{feed_forward.1} parent=0 // pred_region
    _
  $region32: #{feed_forward.1} parent=0 // pred_fallthru
    _
  // Predicated region
  $region33: #{feed_forward.1} parent=0 // pred_check
    _
  $region34: #{feed_forward.1} parent=0 // pred_check_branch
    %981 = sbr.rel (0) target = $region36
  $region35: #{feed_forward.1} parent=0 // pred_region
    _
  $region36: #{feed_forward.1} parent=0 // pred_fallthru
    _

</llo_original>
